<compile_context>
chip_gen: v7x
topology: tpu7x:2x2x1
jax: 0.10.0
libtpu: 0.0.40
codegen_flags: <defaults>
</compile_context>

<pallas_src>
import functools
import math

import jax
import jax.numpy as jnp
from jax.experimental import pallas as pl
from jax.experimental.pallas import tpu as pltpu

_EPS = 1e-12


def _round_up(v, mult):
    return (v + mult - 1) // mult * mult


def _chebyshev(x, m):
    # self.mlambda[m] from the PyTorch module (m is static).
    if m == 0:
        return jnp.ones_like(x)
    if m == 1:
        return x
    if m == 2:
        return 2.0 * x * x - 1.0
    if m == 3:
        return (4.0 * x * x - 3.0) * x
    if m == 4:
        x2 = x * x
        return 8.0 * x2 * x2 - 8.0 * x2 + 1.0
    if m == 5:
        x2 = x * x
        return (16.0 * x2 * x2 - 20.0 * x2 + 5.0) * x
    raise ValueError("m must be in [0, 5]")


def _cus_angle_linear_kernel(x_ref, wt_ref, invw_ref, cos_ref, phi_ref, *, m):
    x = x_ref[...]                        # (TB, D), native dtype -> MXU
    wt = wt_ref[...]                      # (D, TC), native dtype -> MXU
    inv_w = invw_ref[...]                 # (1, TC), f32 (precomputed 1/||w_c||)

    # raw = x @ W.T tile — plain NN contraction, no in-kernel transpose.
    raw = jnp.dot(x, wt, preferred_element_type=jnp.float32)   # (TB, TC) f32

    # Row L2 norm of the x tile; normalization is folded into post-matmul scaling.
    xf = x.astype(jnp.float32)
    sumsq = jnp.sum(xf * xf, axis=1, keepdims=True)            # (TB, 1)
    inv_xlen = jax.lax.rsqrt(jnp.maximum(sumsq, _EPS * _EPS))  # 1/max(||x||, eps) (EUP)
    x_len = jnp.maximum(jnp.sqrt(sumsq), _EPS)                 # max(||x||, eps)    (EUP)

    cos_x_len = raw * inv_w                # == cos_theta * x_len  (first output)
    cos_theta = cos_x_len * inv_xlen       # true cos_theta in [-1, 1]

    cos_m_theta = _chebyshev(cos_theta, m)

    # k = floor(m * acos(cos_theta) / pi).  acos is monotone decreasing, so
    # k >= j  <=>  cos_theta <= cos(j*pi/m).  Accumulate (-1)^k in the same loop.
    k = jnp.zeros_like(cos_theta)
    sign = jnp.ones_like(cos_theta)
    for j in range(1, m + 1):
        ind = (cos_theta <= jnp.float32(math.cos(j * math.pi / m))).astype(jnp.float32)
        k = k + ind
        sign = sign * (1.0 - 2.0 * ind)

    phi_theta = sign * cos_m_theta - 2.0 * k

    cos_ref[...] = cos_x_len.astype(cos_ref.dtype)
    phi_ref[...] = (phi_theta * x_len).astype(phi_ref.dtype)


def _choose_tiles(B, C_pad, D, x_itemsize, w_itemsize, budget_bytes=20 * 1024 * 1024):
    """Pick (TB, TC) so the double-buffered footprint fits v7x's smaller VMEM."""
    TB = min(256, _round_up(B, 8))
    TC = min(256, C_pad)

    def footprint(tb, tc):
        # 2x for BlockSpec double-buffering; outputs are f32.
        return 2 * (tb * D * x_itemsize + D * tc * w_itemsize + tc * 4
                    + 2 * tb * tc * 4)

    while footprint(TB, TC) > budget_bytes and TC > 128:
        TC //= 2
    while footprint(TB, TC) > budget_bytes and TB > 8:
        TB = max(8, (TB // 2) // 8 * 8)
    # TODO(synk): for very large in_features (f32 D >~ 8K) add a K grid axis with a
    # VMEM f32 accumulator instead of holding full-D operand tiles.
    return TB, TC


def cus_angle_linear(x, weight, m=4):
    """Pallas implementation of CusAngleLinear.forward.

    x: (B, D); weight: (C, D) in PyTorch nn.Linear layout.
    Returns (cos_theta * x_len, phi_theta * x_len), each (B, C) f32.
    """
    B, D = x.shape
    C, Dw = weight.shape
    assert D == Dw
    assert 0 <= m <= 5

    # One-time XLA precompute (layout plumbing, not per-tile work):
    #  - W.T so the kernel runs a plain (TB,D)@(D,TC) MXU matmul, lane-dense along C.
    #  - per-class inverse weight norm, so it is not recomputed for every batch tile.
    w_f32 = weight.astype(jnp.float32)
    inv_w_len = jax.lax.rsqrt(
        jnp.maximum(jnp.sum(w_f32 * w_f32, axis=1), _EPS * _EPS)
    ).reshape(1, C)
    wt = weight.T  # (D, C)

    C_pad = _round_up(C, 128)
    TB, TC = _choose_tiles(B, C_pad, D, x.dtype.itemsize, weight.dtype.itemsize)
    C_pad = _round_up(C_pad, TC)
    B_pad = _round_up(B, TB)

    x_p = jnp.pad(x, ((0, B_pad - B), (0, 0))) if B_pad != B else x
    wt_p = jnp.pad(wt, ((0, 0), (0, C_pad - C))) if C_pad != C else wt
    invw_p = (jnp.pad(inv_w_len, ((0, 0), (0, C_pad - C)))
              if C_pad != C else inv_w_len)

    grid = (B_pad // TB, C_pad // TC)
    kernel = functools.partial(_cus_angle_linear_kernel, m=m)

    cos_p, phi_p = pl.pallas_call(
        kernel,
        grid=grid,
        in_specs=[
            pl.BlockSpec((TB, D), lambda i, j: (i, 0)),
            pl.BlockSpec((D, TC), lambda i, j: (0, j)),
            pl.BlockSpec((1, TC), lambda i, j: (0, j)),
        ],
        out_specs=(
            pl.BlockSpec((TB, TC), lambda i, j: (i, j)),
            pl.BlockSpec((TB, TC), lambda i, j: (i, j)),
        ),
        out_shape=(
            jax.ShapeDtypeStruct((B_pad, C_pad), jnp.float32),
            jax.ShapeDtypeStruct((B_pad, C_pad), jnp.float32),
        ),
        compiler_params=pltpu.CompilerParams(
            dimension_semantics=("parallel", "parallel"),
        ),
    )(x_p, wt_p, invw_p)

    return cos_p[:B, :C], phi_p[:B, :C]


def _reference(x, weight, m=4):
    # Pure-JAX reference mirroring the PyTorch forward, for a sanity check.
    eps = 1e-12
    x_len = jnp.maximum(jnp.linalg.norm(x, axis=1, keepdims=True), eps)
    x_norm = x / x_len
    w_norm = weight / jnp.maximum(
        jnp.linalg.norm(weight, axis=1, keepdims=True), eps)
    cos_theta = x_norm @ w_norm.T
    cos_m_theta = _chebyshev(cos_theta, m)
    theta = jnp.arccos(jnp.clip(cos_theta, -1.0, 1.0))
    k = jnp.floor(m * theta / math.pi)
    phi = (-1.0) ** k * cos_m_theta - 2.0 * k
    return cos_theta * x_len, phi * x_len


if __name__ == "__main__":
    B, in_features, out_features, m = 8, 32, 16, 4

    key = jax.random.PRNGKey(0)
    kx, kw = jax.random.split(key)

    x = jax.random.normal(kx, (B, in_features), dtype=jnp.float32)

    # xavier_uniform_ for weight of shape (out_features, in_features)
    bound = math.sqrt(6.0 / (in_features + out_features))
    weight = jax.random.uniform(
        kw, (out_features, in_features), minval=-bound, maxval=bound,
        dtype=jnp.float32)

    cos_theta, phi_theta = cus_angle_linear(x, weight, m=m)
    jax.block_until_ready((cos_theta, phi_theta))

    # Light sanity check against pure-JAX reference.
    ref_cos, ref_phi = _reference(x, weight, m=m)
    assert cos_theta.shape == (B, out_features)
    assert phi_theta.shape == (B, out_features)
    assert jnp.allclose(cos_theta, ref_cos, atol=1e-4, rtol=1e-4)
    assert jnp.allclose(phi_theta, ref_phi, atol=1e-4, rtol=1e-4)

    print("KERNEL_OK")
</pallas_src>

<mosaic_0001>
module attributes {stable_mosaic.version = 11 : i64} {
  func.func @_cus_angle_linear_kernel(%arg0: i32, %arg1: i32, %arg2: memref<8x32xf32, #tpu.memory_space<vmem>>, %arg3: memref<32x128xf32, #tpu.memory_space<vmem>>, %arg4: memref<1x128xf32, #tpu.memory_space<vmem>>, %arg5: memref<8x128xf32, #tpu.memory_space<vmem>>, %arg6: memref<8x128xf32, #tpu.memory_space<vmem>>) attributes {dimension_semantics = [#tpu.dimension_semantics<parallel>, #tpu.dimension_semantics<parallel>], iteration_bounds = array<i64: 1, 1>, scalar_prefetch = 0 : i64, scratch_operands = 0 : i64, tpu.core_type = #tpu.core_type<tc>, window_params = [{transform_indices = @transform_0, window_bounds = array<i64: 8, 32>}, {transform_indices = @transform_1, window_bounds = array<i64: 32, 128>}, {transform_indices = @transform_2, window_bounds = array<i64: 1, 128>}, {transform_indices = @transform_3, window_bounds = array<i64: 8, 128>}, {transform_indices = @transform_4, window_bounds = array<i64: 8, 128>}]} {
    %c0 = arith.constant 0 : index
    %c0_0 = arith.constant 0 : index
    %0 = vector.load %arg2[%c0, %c0_0] : memref<8x32xf32, #tpu.memory_space<vmem>>, vector<8x32xf32>
    %c0_1 = arith.constant 0 : index
    %c0_2 = arith.constant 0 : index
    %1 = vector.load %arg3[%c0_1, %c0_2] : memref<32x128xf32, #tpu.memory_space<vmem>>, vector<32x128xf32>
    %c0_3 = arith.constant 0 : index
    %c0_4 = arith.constant 0 : index
    %2 = vector.load %arg4[%c0_3, %c0_4] : memref<1x128xf32, #tpu.memory_space<vmem>>, vector<1x128xf32>
    %cst = arith.constant dense<0.000000e+00> : vector<8x128xf32>
    %3 = tpu.matmul %0, %1, %cst {dimension_numbers = #tpu.dot_dimension_numbers<[1], [0], [0], [1], [0, 0, 1, 1], [], []>} : vector<8x32xf32>, vector<32x128xf32>, vector<8x128xf32> -> vector<8x128xf32>
    %4 = arith.mulf %0, %0 : vector<8x32xf32>
    %cst_5 = arith.constant dense<0.000000e+00> : vector<8xf32>
    %5 = vector.multi_reduction <add>, %4, %cst_5 [1] : vector<8x32xf32> to vector<8xf32>
    %6 = vector.shape_cast %5 : vector<8xf32> to vector<8x1xf32>
    %cst_6 = arith.constant 1.000000e-24 : f32
    %7 = vector.broadcast %cst_6 : f32 to vector<8x1xf32>
    %8 = arith.maximumf %6, %7 : vector<8x1xf32>
    %9 = math.rsqrt %8 : vector<8x1xf32>
    %10 = math.sqrt %6 : vector<8x1xf32>
    %cst_7 = arith.constant 9.99999996E-13 : f32
    %11 = vector.broadcast %cst_7 : f32 to vector<8x1xf32>
    %12 = arith.maximumf %10, %11 : vector<8x1xf32>
    %13 = vector.broadcast %2 : vector<1x128xf32> to vector<8x128xf32>
    %14 = arith.mulf %3, %13 : vector<8x128xf32>
    %15 = vector.broadcast %9 : vector<8x1xf32> to vector<8x128xf32>
    %16 = arith.mulf %14, %15 : vector<8x128xf32>
    %17 = arith.mulf %16, %16 : vector<8x128xf32>
    %cst_8 = arith.constant 8.000000e+00 : f32
    %18 = vector.broadcast %cst_8 : f32 to vector<8x128xf32>
    %19 = arith.mulf %18, %17 : vector<8x128xf32>
    %20 = arith.mulf %19, %17 : vector<8x128xf32>
    %cst_9 = arith.constant 8.000000e+00 : f32
    %21 = vector.broadcast %cst_9 : f32 to vector<8x128xf32>
    %22 = arith.mulf %21, %17 : vector<8x128xf32>
    %23 = arith.subf %20, %22 : vector<8x128xf32>
    %cst_10 = arith.constant 1.000000e+00 : f32
    %24 = vector.broadcast %cst_10 : f32 to vector<8x128xf32>
    %25 = arith.addf %23, %24 : vector<8x128xf32>
    %cst_11 = arith.constant 0.000000e+00 : f32
    %26 = vector.broadcast %cst_11 : f32 to vector<8x128xf32>
    %cst_12 = arith.constant 1.000000e+00 : f32
    %27 = vector.broadcast %cst_12 : f32 to vector<8x128xf32>
    %cst_13 = arith.constant 0.707106769 : f32
    %28 = vector.broadcast %cst_13 : f32 to vector<8x128xf32>
    %29 = arith.cmpf ole, %16, %28 : vector<8x128xf32>
    %30 = arith.extui %29 : vector<8x128xi1> to vector<8x128xi32>
    %31 = arith.sitofp %30 : vector<8x128xi32> to vector<8x128xf32>
    %32 = arith.addf %26, %31 : vector<8x128xf32>
    %cst_14 = arith.constant 2.000000e+00 : f32
    %33 = vector.broadcast %cst_14 : f32 to vector<8x128xf32>
    %34 = arith.mulf %33, %31 : vector<8x128xf32>
    %cst_15 = arith.constant 1.000000e+00 : f32
    %35 = vector.broadcast %cst_15 : f32 to vector<8x128xf32>
    %36 = arith.subf %35, %34 : vector<8x128xf32>
    %37 = arith.mulf %27, %36 : vector<8x128xf32>
    %cst_16 = arith.constant 6.12323426E-17 : f32
    %38 = vector.broadcast %cst_16 : f32 to vector<8x128xf32>
    %39 = arith.cmpf ole, %16, %38 : vector<8x128xf32>
    %40 = arith.extui %39 : vector<8x128xi1> to vector<8x128xi32>
    %41 = arith.sitofp %40 : vector<8x128xi32> to vector<8x128xf32>
    %42 = arith.addf %32, %41 : vector<8x128xf32>
    %cst_17 = arith.constant 2.000000e+00 : f32
    %43 = vector.broadcast %cst_17 : f32 to vector<8x128xf32>
    %44 = arith.mulf %43, %41 : vector<8x128xf32>
    %cst_18 = arith.constant 1.000000e+00 : f32
    %45 = vector.broadcast %cst_18 : f32 to vector<8x128xf32>
    %46 = arith.subf %45, %44 : vector<8x128xf32>
    %47 = arith.mulf %37, %46 : vector<8x128xf32>
    %cst_19 = arith.constant -0.707106769 : f32
    %48 = vector.broadcast %cst_19 : f32 to vector<8x128xf32>
    %49 = arith.cmpf ole, %16, %48 : vector<8x128xf32>
    %50 = arith.extui %49 : vector<8x128xi1> to vector<8x128xi32>
    %51 = arith.sitofp %50 : vector<8x128xi32> to vector<8x128xf32>
    %52 = arith.addf %42, %51 : vector<8x128xf32>
    %cst_20 = arith.constant 2.000000e+00 : f32
    %53 = vector.broadcast %cst_20 : f32 to vector<8x128xf32>
    %54 = arith.mulf %53, %51 : vector<8x128xf32>
    %cst_21 = arith.constant 1.000000e+00 : f32
    %55 = vector.broadcast %cst_21 : f32 to vector<8x128xf32>
    %56 = arith.subf %55, %54 : vector<8x128xf32>
    %57 = arith.mulf %47, %56 : vector<8x128xf32>
    %cst_22 = arith.constant -1.000000e+00 : f32
    %58 = vector.broadcast %cst_22 : f32 to vector<8x128xf32>
    %59 = arith.cmpf ole, %16, %58 : vector<8x128xf32>
    %60 = arith.extui %59 : vector<8x128xi1> to vector<8x128xi32>
    %61 = arith.sitofp %60 : vector<8x128xi32> to vector<8x128xf32>
    %62 = arith.addf %52, %61 : vector<8x128xf32>
    %cst_23 = arith.constant 2.000000e+00 : f32
    %63 = vector.broadcast %cst_23 : f32 to vector<8x128xf32>
    %64 = arith.mulf %63, %61 : vector<8x128xf32>
    %cst_24 = arith.constant 1.000000e+00 : f32
    %65 = vector.broadcast %cst_24 : f32 to vector<8x128xf32>
    %66 = arith.subf %65, %64 : vector<8x128xf32>
    %67 = arith.mulf %57, %66 : vector<8x128xf32>
    %68 = arith.mulf %67, %25 : vector<8x128xf32>
    %cst_25 = arith.constant 2.000000e+00 : f32
    %69 = vector.broadcast %cst_25 : f32 to vector<8x128xf32>
    %70 = arith.mulf %69, %62 : vector<8x128xf32>
    %71 = arith.subf %68, %70 : vector<8x128xf32>
    %c0_26 = arith.constant 0 : index
    %c0_27 = arith.constant 0 : index
    %72 = vector.load %arg5[%c0_26, %c0_27] : memref<8x128xf32, #tpu.memory_space<vmem>>, vector<8x128xf32>
    tpu.vector_store %arg5[%c0_26, %c0_27], %14 {strides = array<i32>} : memref<8x128xf32, #tpu.memory_space<vmem>>, vector<8x128xf32>,
    %73 = vector.broadcast %12 : vector<8x1xf32> to vector<8x128xf32>
    %74 = arith.mulf %71, %73 : vector<8x128xf32>
    %c0_28 = arith.constant 0 : index
    %c0_29 = arith.constant 0 : index
    %75 = vector.load %arg6[%c0_28, %c0_29] : memref<8x128xf32, #tpu.memory_space<vmem>>, vector<8x128xf32>
    tpu.vector_store %arg6[%c0_28, %c0_29], %74 {strides = array<i32>} : memref<8x128xf32, #tpu.memory_space<vmem>>, vector<8x128xf32>,
    return
  }
  func.func @transform_0(%arg0: i32, %arg1: i32) -> (i32, i32) {
    %c0_i32 = arith.constant 0 : i32
    %c0_i32_0 = arith.constant 0 : i32
    return %arg0, %c0_i32 : i32, i32
  }
  func.func @transform_1(%arg0: i32, %arg1: i32) -> (i32, i32) {
    %c0_i32 = arith.constant 0 : i32
    %c0_i32_0 = arith.constant 0 : i32
    return %c0_i32, %arg1 : i32, i32
  }
  func.func @transform_2(%arg0: i32, %arg1: i32) -> (i32, i32) {
    %c0_i32 = arith.constant 0 : i32
    %c0_i32_0 = arith.constant 0 : i32
    return %c0_i32, %arg1 : i32, i32
  }
  func.func @transform_3(%arg0: i32, %arg1: i32) -> (i32, i32) {
    %c0_i32 = arith.constant 0 : i32
    return %arg0, %arg1 : i32, i32
  }
  func.func @transform_4(%arg0: i32, %arg1: i32) -> (i32, i32) {
    %c0_i32 = arith.constant 0 : i32
    return %arg0, %arg1 : i32, i32
  }
}

</mosaic_0001>

<llo_original>
// kernel: tpu_custom_call.1
$region0: #{tpu_custom_call.1}
  #allocation0 [shape = 'u32[]', space=smem, size = 0x4, offset = 0x4, fixed_abs, tag = 'smem constant byte address 0x4 - core index']
  #allocation1 [shape = 'u32[144,128]{1,0:T(1,128)}', space=vmem, size = 0x12000, scoped, tag = 'internal scratch']
  %s0 = inlined_call_operand.hbm [shape: f32[8,32], index: 0, kind: input, shape index: {}]
  %s1 = inlined_call_operand.hbm [shape: f32[32,128], index: 1, kind: input, shape index: {}]
  %s2 = inlined_call_operand.vmem [shape: f32[1,128], index: 2, kind: input, shape index: {}]
  %s3 = inlined_call_operand.hbm [shape: f32[8,128], index: 3, kind: output, shape index: {0}]
  %s4 = inlined_call_operand.hbm [shape: f32[8,128], index: 4, kind: output, shape index: {1}]
  %5 = xla_tuple %s3, %s4
  %s6 = sld [smem:[#allocation0]]
  $region38: #{tpu_custom_call.1} parent=0
    _
  %s8 = ssub.s32 1, %s6
  %s9 = scalar_select 0, %s8, %s6
  $region1: #{tpu_custom_call.1} parent=0
    #allocation2 [shape = 'u8[4096]{0}', space=vmem, size = 0x1000, scoped, tag = 'input window, operand 0, single buffered']
    #allocation3 [shape = 's32[1]{0}', space=sflag, size = 0x4, scoped, tag = 'scoped memory for tpu_custom_call.1']
    #allocation4 [shape = 's32[1]{0}', space=sflag, size = 0x4, scoped, tag = 'scoped memory for tpu_custom_call.1']
    #allocation5 [shape = 'u8[16384]{0}', space=vmem, size = 0x4000, scoped, tag = 'input window, operand 1, single buffered']
    #allocation6 [shape = 's32[1]{0}', space=sflag, size = 0x4, scoped, tag = 'scoped memory for tpu_custom_call.1']
    #allocation7 [shape = 'u8[4096]{0}', space=vmem, size = 0x1000, scoped, tag = 'output window, operand 0, single buffered']
    #allocation8 [shape = 'u8[4096]{0}', space=vmem, size = 0x1000, scoped, tag = 'output window, operand 1, single buffered']
    #allocation9 [shape = 's32[1]{0}', space=sflag, size = 0x4, scoped, tag = 'scoped memory for tpu_custom_call.1']
    %10 = vsyncpa [#allocation3], 0
    %11 = vsyncpa [#allocation6], 0
    %12 = vsyncpa [#allocation4], 0
    %13 = vsyncpa [#allocation9], 0
    // Predicated region
    $region2: #{tpu_custom_call.1} parent=1 // pred_check
      _
    $region3: #{tpu_custom_call.1} parent=1 // pred_check_branch
      %15 = sbr.rel (0) target = $region5
    $region4: #{tpu_custom_call.1} parent=1 // pred_region
      %s17 = ssub.s32 128, 128
      %18 = vsyncadd [#allocation3], %s17
      %s20 = sshll.u32 [#allocation2], 4
      %s21 = int_to_ptr.vmem [resolvable:$true] %s20
      %23 = dma.hbm_to_vmem [thread:$0]  %s0, 128, %s21, [#allocation3]
    $region5: #{tpu_custom_call.1} parent=1 // pred_fallthru
      _
    // Predicated region
    $region6: #{tpu_custom_call.1} parent=1 // pred_check
      _
    $region7: #{tpu_custom_call.1} parent=1 // pred_check_branch
      %25 = sbr.rel (0) target = $region9
    $region8: #{tpu_custom_call.1} parent=1 // pred_region
      %s27 = ssub.s32 512, 512
      %28 = vsyncadd [#allocation6], %s27
      %s29 = sshll.u32 [#allocation5], 4
      %s30 = int_to_ptr.vmem [resolvable:$true] %s29
      %35 = dma.hbm_to_vmem [thread:$0]  %s1, 512, %s30, [#allocation6], 128, 128, 8
    $region9: #{tpu_custom_call.1} parent=1 // pred_fallthru
      _
    // Predicated region
    $region10: #{tpu_custom_call.1} parent=1 // pred_check
      _
    $region11: #{tpu_custom_call.1} parent=1 // pred_check_branch
      %37 = sbr.rel (0) target = $region13
    $region12: #{tpu_custom_call.1} parent=1 // pred_region
      _
    $region13: #{tpu_custom_call.1} parent=1 // pred_fallthru
      _
    // Predicated region
    $region14: #{tpu_custom_call.1} parent=1 // pred_check
      _
    $region15: #{tpu_custom_call.1} parent=1 // pred_check_branch
      %39 = sbr.rel (0) target = $region17
    $region16: #{tpu_custom_call.1} parent=1 // pred_region
      %40 = dma.done [#allocation3], 128
    $region17: #{tpu_custom_call.1} parent=1 // pred_fallthru
      _
    // Predicated region
    $region18: #{tpu_custom_call.1} parent=1 // pred_check
      _
    $region19: #{tpu_custom_call.1} parent=1 // pred_check_branch
      %42 = sbr.rel (0) target = $region21
    $region20: #{tpu_custom_call.1} parent=1 // pred_region
      %43 = dma.done [#allocation6], 512
    $region21: #{tpu_custom_call.1} parent=1 // pred_fallthru
      _
    %v44 = vld [vmem:[#allocation2] sm:$0xff]
    %v45 = vld [vmem:[#allocation5] sm:$0xff]
    %v46 = vld [vmem:[#allocation5 + $0x8] sm:$0xff]
    %v47 = vld [vmem:[#allocation5 + $0x10] sm:$0xff]
    %v48 = vld [vmem:[#allocation5 + $0x18] sm:$0xff]
    %v49 = vld [vmem:[%s2] sm:$0x1]
    %vm50 = vcmask 261120
    %v52 = vsel %vm50, %v44, 0
    %54 = vmatprep.subr.mxu0 0.0
    %55 = vmatpush1.msra.mxu0 %v45
    %56 = vmatprep.subr.mxu0 0.0
    %57 = vmatpush1.msra.mxu0 %v46
    %58 = vmatprep.subr.mxu0 0.0
    %59 = vmatpush1.msra.mxu0 %v47
    %60 = vmatprep.subr.mxu0 0.0
    %61 = vmatpush1.msra.mxu0 %v48
    %62 = vmatprep.subr.mxu0 0.0
    %63 = vmatpush1.msra.mxu0 0.0
    %64 = vmatprep.subr.mxu0 0.0
    %65 = vmatpush1.msra.mxu0 0.0
    %66 = vmatprep.subr.mxu0 0.0
    %67 = vmatpush1.msra.mxu0 0.0
    %68 = vmatprep.subr.mxu0 0.0
    %69 = vmatpush1.msra.mxu0 0.0
    %70 = vmatprep.subr.mxu0 0.0
    %71 = vmatpush1.msra.mxu0 0.0
    %72 = vmatprep.subr.mxu0 0.0
    %73 = vmatpush1.msra.mxu0 0.0
    %74 = vmatprep.subr.mxu0 0.0
    %75 = vmatpush1.msra.mxu0 0.0
    %76 = vmatprep.subr.mxu0 0.0
    %77 = vmatpush1.msra.mxu0 0.0
    %78 = vmatprep.subr.mxu0 0.0
    %79 = vmatpush1.msra.mxu0 0.0
    %80 = vmatprep.subr.mxu0 0.0
    %81 = vmatpush1.msra.mxu0 0.0
    %82 = vmatprep.subr.mxu0 0.0
    %83 = vmatpush1.msra.mxu0 0.0
    %84 = vmatprep.subr.mxu0 0.0
    %85 = vmatpush1.msra.mxu0 0.0
    %86 = vmatprep.subr.mxu0 0.0
    %87 = vmatpush1.msra.mxu0 0.0
    %88 = vmatprep.subr.mxu0 0.0
    %89 = vmatpush1.msra.mxu0 0.0
    %90 = vmatprep.subr.mxu0 0.0
    %91 = vmatpush1.msra.mxu0 0.0
    %92 = vmatprep.subr.mxu0 0.0
    %93 = vmatpush1.msra.mxu0 0.0
    %94 = vmatprep.subr.mxu0 0.0
    %95 = vmatpush1.msra.mxu0 0.0
    %96 = vmatprep.subr.mxu0 0.0
    %97 = vmatpush1.msra.mxu0 0.0
    %98 = vmatprep.subr.mxu0 0.0
    %99 = vmatpush1.msra.mxu0 0.0
    %100 = vmatprep.subr.mxu0 0.0
    %101 = vmatpush1.msra.mxu0 0.0
    %102 = vmatprep.subr.mxu0 0.0
    %103 = vmatpush1.msra.mxu0 0.0
    %104 = vmatprep.subr.mxu0 0.0
    %105 = vmatpush1.msra.mxu0 0.0
    %106 = vmatprep.subr.mxu0 0.0
    %107 = vmatpush1.msra.mxu0 0.0
    %108 = vmatprep.subr.mxu0 0.0
    %109 = vmatpush1.msra.mxu0 0.0
    %110 = vmatprep.subr.mxu0 0.0
    %111 = vmatpush1.msra.mxu0 0.0
    %112 = vmatprep.subr.mxu0 0.0
    %113 = vmatpush1.msra.mxu0 0.0
    %114 = vmatprep.subr.mxu0 0.0
    %115 = vmatpush1.msra.mxu0 0.0
    %116 = vmatprep.subr.mxu0 0.0
    %117 = vmatpush1.msra.mxu0 0.0
    %118 = vmatprep.mubr.f32.mxu0 0.0
    %119 = vmatmul.mubr.f32.gmra.mrb[0].mxu0 %v52
    %v120 = vpop.f32.mrb[0].mxu0
    %v121 = vadd.f32 0.0, %v120
    %v122 = vpop.f32.mrb[0].mxu0
    %123 = vdwg.mxu0
    %v124 = vmul.f32 %v44, %v44
    %v125 = vsel %vm50, %v124, 0.0
    %126 = vadd.xlane.f32.xlu0 %v125
    %v127 = vpop.xlane.xlu0 %126
    %v128 = vmax.f32 %v127, 1e-24
    %v129 = vrsqrt.pop %v128
    %v130 = vrsqrt.pop %v127
    %v131 = vmul.f32 %v127, %v130
    %vm132 = vcmp.eq.f32.partialorder %v127, inf
    %v133 = vsel %vm132, %v127, %v131
    %vm134 = vcmp.eq.f32.partialorder %v127, 0.0
    %v135 = vand.u32 %v127, 2147483648
    %v136 = vsel %vm134, %v135, %v133
    %v137 = vmax.f32 %v136, 1e-12
    %v139 = vlaneseq
    %v140 = vshrl.u32 %v139, 7
    %v141 = vsub.s32 0, %v140
    %v142 = vrot.slane %v49, %v141
    %v144 = vmul.f32 %v121, %v142
    %v145 = vmul.f32 %v144, %v129
    %v146 = vmul.f32 %v145, %v145
    %v147 = vmul.f32 %v146, 8.0
    %v148 = vmul.f32 %v147, %v146
    %v149 = vsub.f32 %v148, %v147
    %v150 = vadd.f32 %v149, 1.0
    %vm151 = vcmp.le.f32.partialorder %v145, 0.70710677
    %v152 = vsel %vm151, 1, 0
    %v153 = vcvt.s32.f32 %v152
    %v154 = vadd.f32 %v153, 0.0
    %v155 = vmul.f32 %v153, 2.0
    %v156 = vsub.f32 1.0, %v155
    %vm157 = vcmp.le.f32.partialorder %v145, 6.123234e-17
    %v158 = vsel %vm157, 1, 0
    %v159 = vcvt.s32.f32 %v158
    %v160 = vadd.f32 %v154, %v159
    %v161 = vmul.f32 %v159, 2.0
    %v162 = vsub.f32 1.0, %v161
    %v163 = vmul.f32 %v156, %v162
    %vm164 = vcmp.le.f32.partialorder %v145, -0.70710677
    %v165 = vsel %vm164, 1, 0
    %v166 = vcvt.s32.f32 %v165
    %v167 = vadd.f32 %v160, %v166
    %v168 = vmul.f32 %v166, 2.0
    %v169 = vsub.f32 1.0, %v168
    %v170 = vmul.f32 %v163, %v169
    %vm171 = vcmp.le.f32.partialorder %v145, -1.0
    %v172 = vsel %vm171, 1, 0
    %v173 = vcvt.s32.f32 %v172
    %v174 = vadd.f32 %v167, %v173
    %v175 = vmul.f32 %v173, 2.0
    %v176 = vsub.f32 1.0, %v175
    %v177 = vmul.f32 %v170, %v176
    %v178 = vmul.f32 %v177, %v150
    %v179 = vmul.f32 %v174, 2.0
    %v180 = vsub.f32 %v178, %v179
    %181 = vst [vmem:[#allocation7] sm:$0xff] %v144
    %v182 = vmul.f32 %v180, %v137
    %183 = vst [vmem:[#allocation8] sm:$0xff] %v182
    // Predicated region
    $region22: #{tpu_custom_call.1} parent=1 // pred_check
      _
    $region23: #{tpu_custom_call.1} parent=1 // pred_check_branch
      %185 = sbr.rel (0) target = $region25
    $region24: #{tpu_custom_call.1} parent=1 // pred_region
      %s187 = ssub.s32 128, 128
      %188 = vsyncadd [#allocation4], %s187
      %s190 = sshll.u32 [#allocation7], 4
      %s191 = int_to_ptr.vmem [resolvable:$true] %s190
      %193 = dma.vmem_to_hbm [thread:$0]  %s191, 128, %s3, [#allocation4]
    $region25: #{tpu_custom_call.1} parent=1 // pred_fallthru
      _
    // Predicated region
    $region26: #{tpu_custom_call.1} parent=1 // pred_check
      _
    $region27: #{tpu_custom_call.1} parent=1 // pred_check_branch
      %195 = sbr.rel (0) target = $region29
    $region28: #{tpu_custom_call.1} parent=1 // pred_region
      %s197 = ssub.s32 128, 128
      %198 = vsyncadd [#allocation9], %s197
      %s200 = sshll.u32 [#allocation8], 4
      %s201 = int_to_ptr.vmem [resolvable:$true] %s200
      %203 = dma.vmem_to_hbm [thread:$0]  %s201, 128, %s4, [#allocation9]
    $region29: #{tpu_custom_call.1} parent=1 // pred_fallthru
      _
    // Predicated region
    $region30: #{tpu_custom_call.1} parent=1 // pred_check
      _
    $region31: #{tpu_custom_call.1} parent=1 // pred_check_branch
      %205 = sbr.rel (0) target = $region33
    $region32: #{tpu_custom_call.1} parent=1 // pred_region
      %206 = dma.done [#allocation4], 128
    $region33: #{tpu_custom_call.1} parent=1 // pred_fallthru
      _
    // Predicated region
    $region34: #{tpu_custom_call.1} parent=1 // pred_check
      _
    $region35: #{tpu_custom_call.1} parent=1 // pred_check_branch
      %208 = sbr.rel (0) target = $region37
    $region36: #{tpu_custom_call.1} parent=1 // pred_region
      %209 = dma.done [#allocation9], 128
    $region37: #{tpu_custom_call.1} parent=1 // pred_fallthru
      _
    %210 = vsyncpa [#allocation3], 1
    %211 = vsyncpa [#allocation6], 1
    %212 = vsyncpa [#allocation4], 1
    %213 = vsyncpa [#allocation9], 1

</llo_original>
